<compile_context>
chip_gen: v7x
topology: tpu7x:2x2x1
jax: 0.10.0
libtpu: 0.0.40
codegen_flags: <defaults>
</compile_context>

<pallas_src>
import functools

import jax
import jax.numpy as jnp
from jax import lax
from jax.experimental import pallas as pl
from jax.experimental.pallas import tpu as pltpu


@functools.lru_cache(maxsize=None)
def _roll_is_jnp_convention() -> bool:
  """One-time calibration of pltpu.roll's rotation direction.

  Returns True if pltpu.roll follows jnp.roll semantics, i.e.
  roll(x, shift, axis)[i] == x[(i - shift) % n].  Runs a tiny (8,128) probe kernel
  once (cached); called outside jit because it inspects a concrete value.
  """
  def probe(x_ref, o_ref):
    o_ref[...] = pltpu.roll(x_ref[...], shift=1, axis=0)

  x = jnp.arange(8 * 128, dtype=jnp.float32).reshape(8, 128)
  y = pl.pallas_call(
      probe, out_shape=jax.ShapeDtypeStruct((8, 128), jnp.float32))(x)
  return bool(y[1, 0] == x[0, 0])


def _vmem_padded_bytes(shape, dtype):
  """Rough VMEM footprint of one buffer after (sublane, lane) tiling/padding."""
  itemsize = jnp.dtype(dtype).itemsize
  dims = list(shape)
  dims[-1] = -(-dims[-1] // 128) * 128
  if len(dims) >= 2:
    sub = 8 * max(1, 4 // itemsize)          # 8 sublanes for f32, 16 for bf16
    dims[-2] = -(-dims[-2] // sub) * sub
  n = 1
  for d in dims:
    n *= d
  return n * itemsize


def _sew_basic_block_kernel(
    x_ref, w1_ref, b1_ref, w2_ref, b2_ref, mask_ref,   # inputs
    out_ref,                                           # output
    v1_ref, v2_ref, lhs_ref,                           # scratch
    *, col_shifts, row_shifts, v_threshold, connect_f, time_block):
  """One (batch-tile, time-block) grid step of the SEW BasicBlock.

  grid = (batch_tiles, T // time_block).  The time axis is sequential
  ("arbitrary"): the IF membrane potentials v1/v2 are carried across it in VMEM
  scratch.  The batch axis is "parallel" (megacore-splittable, per-core scratch).
  """

  @pl.when(pl.program_id(1) == 0)
  def _init():
    v1_ref[...] = jnp.zeros_like(v1_ref)       # sn1 membrane potential
    v2_ref[...] = jnp.zeros_like(v2_ref)       # sn2 membrane potential

  # Real-pixel predicate (halo / alignment-tail rows are False).  Folded into the
  # spike predicate below instead of a separate (n, P) f32 multiply.
  valid = mask_ref[...] != 0.0                 # (n_tile, 1) bool

  def conv_bn(a, w_ref, b_ref):
    # 3x3 conv (+ folded BN scale) as ONE MXU matmul: im2col packs the 9 taps into
    # the contraction dim (K = 9*C).  Spatial shifts are XLU rolls on the flattened
    # zero-padded layout (true zeros at image borders -> no per-tap boundary masks).
    # Rolls are composed: the two +/-1-column rotations are done once and the +/-Wp
    # row shifts are applied to those bases; with Wp % 8 == 0 the row shifts are
    # whole-sublane moves (cheap on the 2 XLU units of v6e/v7x).
    c = a.shape[-1]
    bases = [a if s == 0 else pltpu.roll(a, shift=s, axis=0) for s in col_shifts]
    for kh in range(3):
      rs = row_shifts[kh]
      for kw in range(3):
        tap = bases[kw] if rs == 0 else pltpu.roll(bases[kw], shift=rs, axis=0)
        k = kh * 3 + kw
        lhs_ref[:, k * c:(k + 1) * c] = tap
    lhs = lhs_ref[...].astype(w_ref.dtype)     # bf16 into the MXU, f32 accumulation
    return jnp.dot(lhs, w_ref[...],
                   preferred_element_type=jnp.float32) + b_ref[...]

  def step(tt, carry):
    x = x_ref[tt].astype(jnp.float32)          # (n_tile, Cin)

    # ---- conv1 + BN1 -> sn1 (IF neuron, hard reset to 0) ----
    v1 = v1_ref[...] + conv_bn(x, w1_ref, b1_ref)
    fire1 = (v1 >= v_threshold) & valid        # pad/tail rows never spike
    spk1 = jnp.where(fire1, 1.0, 0.0)          # exactly 0/1; zeros feed conv2 at pads
    v1_ref[...] = jnp.where(fire1, 0.0, v1)

    # ---- conv2 + BN2 -> sn2 ----
    v2 = v2_ref[...] + conv_bn(spk1, w2_ref, b2_ref)
    fire2 = v2 >= v_threshold
    v2_ref[...] = jnp.where(fire2, 0.0, v2)

    # ---- SEW residual connection with the identity branch ----
    # (pad rows are discarded by the wrapper, so they need no masking here)
    if connect_f == 'ADD':
      out = x + jnp.where(fire2, 1.0, 0.0)
    elif connect_f == 'AND':
      out = jnp.where(fire2, x, 0.0)           # spk2 * x
    elif connect_f == 'IAND':
      out = jnp.where(fire2, 0.0, x)           # x * (1 - spk2)
    else:
      raise NotImplementedError(connect_f)
    out_ref[tt] = out.astype(out_ref.dtype)
    return carry

  if time_block <= 8:                          # short fixed trip count: unroll
    for tt in range(time_block):
      step(tt, 0)
  else:
    lax.fori_loop(0, time_block, step, 0)


def basic_block_forward(x, params, *, connect_f='ADD', v_threshold=1.0,
                        images_per_tile=None, time_block=None,
                        compute_dtype=jnp.bfloat16, align_width=None,
                        vmem_budget_bytes=20 << 20):
  """SEW BasicBlock forward.

  x: [T, B, C, H, W] (PyTorch NCHW per timestep).
  Returns [T, B, planes, H, W] in x.dtype.

  Note: compute_dtype=bf16 rounds x before the identity-branch connect; pass
  compute_dtype=jnp.float32 for bit-faithful f32 numerics.
  """
  if connect_f not in ('ADD', 'AND', 'IAND'):
    raise NotImplementedError(connect_f)
  T, B, Cin, H, W = x.shape
  w1 = params['conv1_w']                       # (planes, Cin, 3, 3), OIHW like PyTorch
  w2 = params['conv2_w']                       # (planes, planes, 3, 3)
  planes = w1.shape[0]
  assert w1.shape == (planes, Cin, 3, 3)
  assert w2.shape == (planes, planes, 3, 3)
  assert Cin == planes, (
      "stride=1, downsample=None => identity branch requires inplanes == planes")

  # ---- fold BatchNorm2d (eval mode) into conv weights + a per-channel bias ----
  eps = 1e-5
  s1 = params['bn1_gamma'] / jnp.sqrt(params['bn1_var'] + eps)
  s2 = params['bn2_gamma'] / jnp.sqrt(params['bn2_var'] + eps)
  b1 = (params['bn1_beta'] - params['bn1_mean'] * s1).reshape(1, planes)
  b2 = (params['bn2_beta'] - params['bn2_mean'] * s2).reshape(1, planes)
  b1 = b1.astype(jnp.float32)
  b2 = b2.astype(jnp.float32)
  # OIHW -> (kh, kw, Cin, planes) -> (9*Cin, planes); tap index k = kh*3 + kw.
  # BN scale folded per OUTPUT channel before the bf16 cast.
  w1k = (jnp.transpose(w1, (2, 3, 1, 0)) * s1).reshape(9 * Cin, planes)
  w2k = (jnp.transpose(w2, (2, 3, 1, 0)) * s2).reshape(9 * planes, planes)
  w1k = w1k.astype(compute_dtype)
  w2k = w2k.astype(compute_dtype)

  # ---- padded, channels-last, spatially-flattened layout ----
  # One zero-pixel halo around every image plus a zero tail that rounds each image
  # up to a multiple of 8 rows (sublane aligned).
  Hp = H + 2
  Wp = W + 2
  wp8 = -(-Wp // 8) * 8
  if align_width is None:
    # Align the row stride to 8 only if the extra zero columns cost <= ~17% more
    # rows (v6e/v7x XLU relief without blowing up small widths like W=16).
    align_width = (wp8 - Wp) * 6 <= Wp
  if align_width:
    Wp = wp8
  s_img = Hp * Wp
  s_pad = -(-s_img // 8) * 8                   # per-image rows, multiple of 8

  # Roll-safety invariant: the largest tap offset (Wp+1) of any valid output row
  # stays inside the same image's zero halo, so rolls never leak pixels across
  # image boundaries into valid outputs.
  assert Wp >= W + 2 and Hp == H + 2
  assert (1 * Wp + 1) - (Wp + 1) >= 0
  assert (H * Wp + W) + (Wp + 1) < s_img <= s_pad

  xt = jnp.transpose(x, (0, 1, 3, 4, 2))                               # (T,B,H,W,C)
  xt = jnp.pad(xt, ((0, 0), (0, 0), (1, 1), (1, Wp - W - 1), (0, 0)))  # (T,B,Hp,Wp,C)
  xt = xt.reshape(T, B, s_img, Cin)
  xt = jnp.pad(xt, ((0, 0), (0, 0), (0, s_pad - s_img), (0, 0)))
  x_flat = xt.reshape(T, B * s_pad, Cin).astype(compute_dtype)

  # ---- tile-size selection, sized against a portable VMEM budget ----
  def est_vmem(ipt, tb):
    n = ipt * s_pad
    tot = 0
    tot += 2 * _vmem_padded_bytes((tb, n, Cin), compute_dtype)      # x (double buffer)
    tot += 2 * _vmem_padded_bytes((tb, n, planes), compute_dtype)   # out
    tot += 2 * _vmem_padded_bytes((9 * Cin, planes), compute_dtype)     # w1
    tot += 2 * _vmem_padded_bytes((9 * planes, planes), compute_dtype)  # w2
    tot += 4 * _vmem_padded_bytes((1, planes), jnp.float32)         # b1, b2
    tot += 2 * _vmem_padded_bytes((n, 1), jnp.float32)              # interior mask
    tot += 2 * _vmem_padded_bytes((n, planes), jnp.float32)         # v1, v2
    tot += _vmem_padded_bytes((n, 9 * Cin), jnp.float32)            # im2col LHS
    return tot

  if images_per_tile is None:
    # Largest batch tile that fits the budget, preferring >= 2 parallel batch
    # tiles when B allows it (keeps both v7x TensorCores fed).
    cands = sorted((d for d in range(1, B + 1) if B % d == 0), reverse=True)
    images_per_tile = 1
    for need_two_tiles in (True, False):
      found = False
      for d in cands:
        if need_two_tiles and B // d < min(2, B):
          continue
        if est_vmem(d, 1) <= vmem_budget_bytes:
          images_per_tile = d
          found = True
          break
      if found:
        break
  assert B % images_per_tile == 0
  b_tiles = B // images_per_tile

  if time_block is None:
    # Largest time block that still fits: amortizes per-grid-step overhead and
    # turns the x / out DMAs into large contiguous transfers.
    time_block = 1
    for d in sorted((d for d in range(1, T + 1) if T % d == 0), reverse=True):
      if est_vmem(images_per_tile, d) <= vmem_budget_bytes:
        time_block = d
        break
  assert T % time_block == 0

  n_tile = images_per_tile * s_pad

  # Interior mask of one batch tile (identical for every tile): nonzero at real pixels.
  p = jnp.arange(s_pad)
  valid = ((p < s_img) & (p // Wp >= 1) & (p // Wp <= H) &
           (p % Wp >= 1) & (p % Wp <= W))
  interior = jnp.tile(valid.astype(jnp.float32),
                      images_per_tile).reshape(n_tile, 1)

  # Conv tap shifts, calibrated to pltpu.roll's rotation direction and decomposed
  # into column (+/-1) and row (+/-Wp) parts for the composed rolls in-kernel.
  jnp_conv = _roll_is_jnp_convention()
  def shift_for(off):
    return ((-off) % n_tile) if jnp_conv else (off % n_tile)
  col_shifts = tuple(shift_for(kw - 1) for kw in range(3))
  row_shifts = tuple(shift_for((kh - 1) * Wp) for kh in range(3))

  kernel = functools.partial(
      _sew_basic_block_kernel,
      col_shifts=col_shifts, row_shifts=row_shifts,
      v_threshold=float(v_threshold), connect_f=connect_f,
      time_block=time_block)

  grid_spec = pltpu.PrefetchScalarGridSpec(
      num_scalar_prefetch=0,
      grid=(b_tiles, T // time_block),           # batch parallel, time sequential
      in_specs=[
          pl.BlockSpec((time_block, n_tile, Cin), lambda bt, t: (t, bt, 0)),  # x
          pl.BlockSpec((9 * Cin, planes), lambda bt, t: (0, 0)),       # conv1 * BN1
          pl.BlockSpec((1, planes), lambda bt, t: (0, 0)),             # bias1
          pl.BlockSpec((9 * planes, planes), lambda bt, t: (0, 0)),    # conv2 * BN2
          pl.BlockSpec((1, planes), lambda bt, t: (0, 0)),             # bias2
          pl.BlockSpec((n_tile, 1), lambda bt, t: (0, 0)),             # interior mask
      ],
      out_specs=pl.BlockSpec((time_block, n_tile, planes),
                             lambda bt, t: (t, bt, 0)),
      scratch_shapes=[
          pltpu.VMEM((n_tile, planes), jnp.float32),      # v1 (sn1 membrane)
          pltpu.VMEM((n_tile, planes), jnp.float32),      # v2 (sn2 membrane)
          pltpu.VMEM((n_tile, 9 * Cin), jnp.float32),     # packed im2col LHS
      ])

  # VMEM limit computed from actual buffer sizes (+50% / +2 MiB headroom for
  # Mosaic-internal scratch), capped under v7x's 64 MiB physical VMEM per core.
  vmem_limit = int(min(max(est_vmem(images_per_tile, time_block) * 3 // 2
                           + (2 << 20), 16 << 20), 64 << 20))

  out_flat = pl.pallas_call(
      kernel,
      out_shape=jax.ShapeDtypeStruct((T, B * s_pad, planes), compute_dtype),
      grid_spec=grid_spec,
      compiler_params=pltpu.CompilerParams(
          dimension_semantics=("parallel", "arbitrary"),
          vmem_limit_bytes=vmem_limit),
  )(x_flat, w1k, b1, w2k, b2, interior)

  # Drop halo / tail rows and restore [T, B, planes, H, W].
  out = out_flat.reshape(T, B, s_pad, planes)[:, :, :s_img, :]
  out = out.reshape(T, B, Hp, Wp, planes)[:, :, 1:H + 1, 1:W + 1, :]
  return jnp.transpose(out, (0, 1, 4, 2, 3)).astype(x.dtype)


if __name__ == "__main__":
  T, B, C, H, W = 4, 2, 8, 16, 16        # [T, batch, channels, height, width]
  planes = C                             # inplanes == planes (stride=1, no downsample)

  key = jax.random.PRNGKey(0)
  ks = jax.random.split(key, 11)
  x = jax.random.uniform(ks[0], (T, B, C, H, W), jnp.float32)

  params = {
      'conv1_w':  0.3 * jax.random.normal(ks[1], (planes, C, 3, 3), jnp.float32),
      'conv2_w':  0.3 * jax.random.normal(ks[2], (planes, planes, 3, 3), jnp.float32),
      'bn1_gamma': 1.0 + 0.1 * jax.random.normal(ks[3], (planes,), jnp.float32),
      'bn1_beta':  0.1 * jax.random.normal(ks[4], (planes,), jnp.float32),
      'bn1_mean':  0.1 * jax.random.normal(ks[5], (planes,), jnp.float32),
      'bn1_var':   1.0 + 0.5 * jax.random.uniform(ks[6], (planes,), jnp.float32),
      'bn2_gamma': 1.0 + 0.1 * jax.random.normal(ks[7], (planes,), jnp.float32),
      'bn2_beta':  0.1 * jax.random.normal(ks[8], (planes,), jnp.float32),
      'bn2_mean':  0.1 * jax.random.normal(ks[9], (planes,), jnp.float32),
      'bn2_var':   1.0 + 0.5 * jax.random.uniform(ks[10], (planes,), jnp.float32),
  }

  out = basic_block_forward(x, params, connect_f='ADD')
  out = jax.block_until_ready(out)
  assert out.shape == (T, B, planes, H, W)
  assert bool(jnp.all(jnp.isfinite(out)))
  print("KERNEL_OK")
</pallas_src>

<mosaic_0001>
module attributes {stable_mosaic.version = 11 : i64} {
  func.func @probe(%arg0: memref<8x128xf32, #tpu.memory_space<vmem>>, %arg1: memref<8x128xf32, #tpu.memory_space<vmem>>) attributes {dimension_semantics = [], scalar_prefetch = 0 : i64, scratch_operands = 0 : i64, tpu.core_type = #tpu.core_type<tc>} {
    %c0 = arith.constant 0 : index
    %c0_0 = arith.constant 0 : index
    %0 = vector.load %arg0[%c0, %c0_0] : memref<8x128xf32, #tpu.memory_space<vmem>>, vector<8x128xf32>
    %c1_i32 = arith.constant 1 : i32
    %1 = tpu.dynamic_rotate %0 by %c1_i32 dim 0 : vector<8x128xf32>, i32 -> vector<8x128xf32>
    %c0_1 = arith.constant 0 : index
    %c0_2 = arith.constant 0 : index
    %2 = vector.load %arg1[%c0_1, %c0_2] : memref<8x128xf32, #tpu.memory_space<vmem>>, vector<8x128xf32>
    tpu.vector_store %arg1[%c0_1, %c0_2], %1 {strides = array<i32>} : memref<8x128xf32, #tpu.memory_space<vmem>>, vector<8x128xf32>,
    return
  }
}

</mosaic_0001>

<llo_original>
// kernel: tpu_custom_call.1
$region0: #{tpu_custom_call.1}
  #allocation0 [shape = 'u32[]', space=smem, size = 0x4, offset = 0x4, fixed_abs, tag = 'smem constant byte address 0x4 - core index']
  #allocation1 [shape = 'u32[144,128]{1,0:T(1,128)}', space=vmem, size = 0x12000, scoped, tag = 'internal scratch']
  %s0 = inlined_call_operand.hbm [shape: f32[8,128], index: 0, kind: input, shape index: {}]
  %s1 = inlined_call_operand.hbm [shape: f32[8,128], index: 1, kind: output, shape index: {}]
  %s2 = sld [smem:[#allocation0]]
  $region18: #{tpu_custom_call.1} parent=0
    _
  %s4 = ssub.s32 1, %s2
  %s5 = scalar_select 0, %s4, %s2
  $region1: #{tpu_custom_call.1} parent=0
    #allocation2 [shape = 'u8[4096]{0}', space=vmem, size = 0x1000, scoped, tag = 'input window, operand 0, single buffered']
    #allocation3 [shape = 's32[1]{0}', space=sflag, size = 0x4, scoped, tag = 'scoped memory for tpu_custom_call.1']
    #allocation4 [shape = 's32[1]{0}', space=sflag, size = 0x4, scoped, tag = 'scoped memory for tpu_custom_call.1']
    #allocation5 [shape = 'u8[4096]{0}', space=vmem, size = 0x1000, scoped, tag = 'output window, operand 0, single buffered']
    %6 = vsyncpa [#allocation3], 0
    %7 = vsyncpa [#allocation4], 0
    // Predicated region
    $region2: #{tpu_custom_call.1} parent=1 // pred_check
      _
    $region3: #{tpu_custom_call.1} parent=1 // pred_check_branch
      %9 = sbr.rel (0) target = $region5
    $region4: #{tpu_custom_call.1} parent=1 // pred_region
      %s11 = ssub.s32 128, 128
      %12 = vsyncadd [#allocation3], %s11
      %s14 = sshll.u32 [#allocation2], 4
      %s15 = int_to_ptr.vmem [resolvable:$true] %s14
      %17 = dma.hbm_to_vmem [thread:$0]  %s0, 128, %s15, [#allocation3]
    $region5: #{tpu_custom_call.1} parent=1 // pred_fallthru
      _
    // Predicated region
    $region6: #{tpu_custom_call.1} parent=1 // pred_check
      _
    $region7: #{tpu_custom_call.1} parent=1 // pred_check_branch
      %19 = sbr.rel (0) target = $region9
    $region8: #{tpu_custom_call.1} parent=1 // pred_region
      %20 = dma.done [#allocation3], 128
    $region9: #{tpu_custom_call.1} parent=1 // pred_fallthru
      _
    %v21 = vld [vmem:[#allocation2] sm:$0xff]
    %v22 = vrot.slane %v21, 7
    %23 = vst [vmem:[#allocation5] sm:$0xff] %v22
    // Predicated region
    $region10: #{tpu_custom_call.1} parent=1 // pred_check
      _
    $region11: #{tpu_custom_call.1} parent=1 // pred_check_branch
      %25 = sbr.rel (0) target = $region13
    $region12: #{tpu_custom_call.1} parent=1 // pred_region
      %s27 = ssub.s32 128, 128
      %28 = vsyncadd [#allocation4], %s27
      %s30 = sshll.u32 [#allocation5], 4
      %s31 = int_to_ptr.vmem [resolvable:$true] %s30
      %33 = dma.vmem_to_hbm [thread:$0]  %s31, 128, %s1, [#allocation4]
    $region13: #{tpu_custom_call.1} parent=1 // pred_fallthru
      _
    // Predicated region
    $region14: #{tpu_custom_call.1} parent=1 // pred_check
      _
    $region15: #{tpu_custom_call.1} parent=1 // pred_check_branch
      %35 = sbr.rel (0) target = $region17
    $region16: #{tpu_custom_call.1} parent=1 // pred_region
      %36 = dma.done [#allocation4], 128
    $region17: #{tpu_custom_call.1} parent=1 // pred_fallthru
      _
    %37 = vsyncpa [#allocation3], 1
    %38 = vsyncpa [#allocation4], 1

</llo_original>
